<compile_context>
chip_gen: v7x
topology: tpu7x:2x2x1
jax: 0.10.0
libtpu: 0.0.40
codegen_flags: <defaults>
</compile_context>

<pallas_src>
import functools
import math

import jax
import jax.numpy as jnp
from jax.experimental import pallas as pl
from jax.experimental.pallas import tpu as pltpu


# ---------------------------------------------------------------------------
# Path A: direct HBM -> HBM DMA (no VMEM relay, single launch, both halves).
# ---------------------------------------------------------------------------
def _dma_split_kernel(x_ref, o1_ref, o2_ref, sem, *, c):
    ch = x_ref.shape[1]
    cp1 = pltpu.make_async_copy(x_ref.at[:, pl.ds(0, c), :, :], o1_ref, sem.at[0])
    cp2 = pltpu.make_async_copy(x_ref.at[:, pl.ds(c, ch - c), :, :], o2_ref, sem.at[1])
    cp1.start()
    cp2.start()
    cp1.wait()
    cp2.wait()


def _split_dma(x, c):
    n, ch, h, w = x.shape
    itemsize = jnp.dtype(x.dtype).itemsize
    return pl.pallas_call(
        functools.partial(_dma_split_kernel, c=c),
        out_shape=(jax.ShapeDtypeStruct((n, c, h, w), x.dtype),
                   jax.ShapeDtypeStruct((n, ch - c, h, w), x.dtype)),
        in_specs=[pl.BlockSpec(memory_space=pl.ANY)],
        out_specs=(pl.BlockSpec(memory_space=pl.ANY),
                   pl.BlockSpec(memory_space=pl.ANY)),
        scratch_shapes=[pltpu.SemaphoreType.DMA((2,))],
        cost_estimate=pl.CostEstimate(
            flops=0, transcendentals=0,
            bytes_accessed=2 * n * ch * h * w * itemsize),
    )(x)


_HBM_SPLIT_OK = None


def _hbm_split_supported():
    """Probe once whether local HBM->HBM strided DMA lowers and runs correctly
    on this backend/toolchain; cache the answer."""
    global _HBM_SPLIT_OK
    if _HBM_SPLIT_OK is None:
        try:
            probe = jnp.arange(2 * 4 * 8 * 8, dtype=jnp.float32).reshape(2, 4, 8, 8)
            a, b = _split_dma(probe, 1)
            a = jax.device_get(a)
            b = jax.device_get(b)
            ref = jax.device_get(probe)
            _HBM_SPLIT_OK = bool((a == ref[:, :1]).all() and (b == ref[:, 1:]).all())
        except Exception:  # unsupported on this Mosaic toolchain -> fall back
            _HBM_SPLIT_OK = False
    return _HBM_SPLIT_OK


# ---------------------------------------------------------------------------
# Path B (fallback): dense (1, B, 128)-block tiled copy through VMEM.
# ---------------------------------------------------------------------------
def _dense_copy_kernel(x_ref, o_ref):
    # Sublane/lane-dense tile copy: full-vreg loads and unmasked stores.
    o_ref[...] = x_ref[...]


def _pick_block_rows(r1, r2, itemsize, cap_bytes=2 << 20):
    """Largest row-block B with B | gcd(r1, r2), B a multiple of the sublane
    packing granularity, and B*128*itemsize <= cap_bytes.  None if impossible."""
    sub = 8 * max(1, 4 // itemsize)          # 8 (f32), 16 (bf16), 32 (int8/fp8)
    g = math.gcd(r1, r2)
    cap_rows = max(sub, cap_bytes // (128 * itemsize))
    best = 0
    d = 1
    while d * d <= g:
        if g % d == 0:
            for cand in (d, g // d):
                if cand % sub == 0 and cand <= cap_rows:
                    best = max(best, cand)
        d += 1
    return best if best > 0 else None


def _dense_tiled_copy(x3, row_off, rows, blk_rows):
    """Copy x3[:, row_off:row_off+rows, :] (x3 is (n, R, 128)) with dense tiles."""
    n = x3.shape[0]
    itemsize = jnp.dtype(x3.dtype).itemsize
    off_blocks = row_off // blk_rows          # exact: blk_rows | row_off
    tile_bytes = blk_rows * 128 * itemsize
    # 1 input + 1 output, double-buffered, plus headroom.
    vmem_limit = int(4 * tile_bytes + (4 << 20))
    return pl.pallas_call(
        _dense_copy_kernel,
        out_shape=jax.ShapeDtypeStruct((n, rows, 128), x3.dtype),
        grid_spec=pltpu.PrefetchScalarGridSpec(
            num_scalar_prefetch=0,
            grid=(n, rows // blk_rows),
            in_specs=[pl.BlockSpec((1, blk_rows, 128),
                                   lambda i, j: (i, j + off_blocks, 0))],
            out_specs=pl.BlockSpec((1, blk_rows, 128), lambda i, j: (i, j, 0)),
        ),
        compiler_params=pltpu.CompilerParams(
            dimension_semantics=("parallel", "parallel"),
            vmem_limit_bytes=vmem_limit),
        cost_estimate=pl.CostEstimate(
            flops=0, transcendentals=0,
            bytes_accessed=2 * n * rows * 128 * itemsize),
    )(x3)


# ---------------------------------------------------------------------------
# Path C (last-resort fallback): whole flattened row per grid step.
# ---------------------------------------------------------------------------
def _split_row_kernel(x_ref, o1_ref, o2_ref, *, s1):
    o1_ref[...] = x_ref[:, :, :s1]
    o2_ref[...] = x_ref[:, :, s1:]


def _split_rows_call(x3, s1, s2):
    # TODO(synk): for very large rows this path should chunk the lane axis
    # instead of using whole-row blocks; fine for CIFAR-scale feature maps.
    n = x3.shape[0]
    total = s1 + s2
    itemsize = jnp.dtype(x3.dtype).itemsize
    vmem_limit = int(min(48 << 20, max(8 << 20, 8 * total * itemsize)))
    return pl.pallas_call(
        functools.partial(_split_row_kernel, s1=s1),
        out_shape=(jax.ShapeDtypeStruct((n, 1, s1), x3.dtype),
                   jax.ShapeDtypeStruct((n, 1, s2), x3.dtype)),
        grid_spec=pltpu.PrefetchScalarGridSpec(
            num_scalar_prefetch=0,
            grid=(n,),
            in_specs=[pl.BlockSpec((1, 1, total), lambda i: (i, 0, 0))],
            out_specs=(pl.BlockSpec((1, 1, s1), lambda i: (i, 0, 0)),
                       pl.BlockSpec((1, 1, s2), lambda i: (i, 0, 0))),
        ),
        compiler_params=pltpu.CompilerParams(
            dimension_semantics=("parallel",),
            vmem_limit_bytes=vmem_limit),
        cost_estimate=pl.CostEstimate(
            flops=0, transcendentals=0,
            bytes_accessed=2 * n * total * itemsize),
    )(x3)


# ---------------------------------------------------------------------------
# Public wrapper: SplitBlock(ratio).forward(x) for NCHW input.
# ---------------------------------------------------------------------------
def split_block(x: jax.Array, ratio: float):
    n, ch, h, w = x.shape
    c = int(ch * ratio)  # same truncation as torch's int(x.size(1) * ratio)

    # Edge cases: a zero-channel half cannot be a BlockSpec block / DMA target.
    if c <= 0:
        return jnp.zeros((n, 0, h, w), x.dtype), x
    if c >= ch:
        return x, jnp.zeros((n, 0, h, w), x.dtype)

    # Path A: direct HBM->HBM DMA of each half (no VMEM relay).
    if _hbm_split_supported():
        return _split_dma(x, c)

    # Fallbacks (only if local HBM->HBM DMA is unavailable on this toolchain).
    hw = h * w
    s1, s2 = c * hw, (ch - c) * hw
    itemsize = jnp.dtype(x.dtype).itemsize

    if s1 % 128 == 0 and s2 % 128 == 0:
        blk = _pick_block_rows(s1 // 128, s2 // 128, itemsize)
        if blk is not None:
            x3 = x.reshape(n, (s1 + s2) // 128, 128)   # split is a row-block split
            out1 = _dense_tiled_copy(x3, 0, s1 // 128, blk)
            out2 = _dense_tiled_copy(x3, s1 // 128, s2 // 128, blk)
            return out1.reshape(n, c, h, w), out2.reshape(n, ch - c, h, w)

    out1, out2 = _split_rows_call(x.reshape(n, 1, ch * hw), s1, s2)
    return out1.reshape(n, c, h, w), out2.reshape(n, ch - c, h, w)


if __name__ == "__main__":
    key = jax.random.PRNGKey(0)
    # Small NCHW input consistent with the module's forward.
    x = jax.random.normal(key, (2, 4, 16, 16), dtype=jnp.float32)
    ratio = 0.5

    y1, y2 = split_block(x, ratio)
    jax.block_until_ready((y1, y2))

    # Reference check (pure JAX slicing, mirrors the PyTorch semantics).
    c = int(x.shape[1] * ratio)
    ref1, ref2 = x[:, :c, :, :], x[:, c:, :, :]
    assert y1.shape == ref1.shape and y2.shape == ref2.shape
    assert jnp.array_equal(y1, ref1) and jnp.array_equal(y2, ref2)

    # Also exercise uneven splits and a shape whose halves are (8,128)-dense.
    x2 = jax.random.normal(jax.random.PRNGKey(1), (2, 8, 16, 16), dtype=jnp.float32)
    for r in (0.5, 0.25, 0.75):
        c2 = int(x2.shape[1] * r)
        a, b = split_block(x2, r)
        jax.block_until_ready((a, b))
        assert jnp.array_equal(a, x2[:, :c2]) and jnp.array_equal(b, x2[:, c2:])

    print("KERNEL_OK")
</pallas_src>

<mosaic_0001>
module attributes {stable_mosaic.version = 11 : i64} {
  func.func @_dma_split_kernel(%arg0: memref<2x4x8x8xf32, #tpu.memory_space<any>>, %arg1: memref<2x1x8x8xf32, #tpu.memory_space<any>>, %arg2: memref<2x3x8x8xf32, #tpu.memory_space<any>>, %arg3: memref<2x!tpu.dma_semaphore, #tpu.memory_space<semaphore_mem>>) attributes {dimension_semantics = [], scalar_prefetch = 0 : i64, scratch_operands = 1 : i64, tpu.core_type = #tpu.core_type<tc>} {
    %c0_i32 = arith.constant 0 : i32
    %c0_i32_0 = arith.constant 0 : i32
    %c0_i32_1 = arith.constant 0 : i32
    %c0_i32_2 = arith.constant 0 : i32
    %c0_i32_3 = arith.constant 0 : i32
    %0 = tpu.memref_slice %arg0[%c0_i32_0, %c0_i32_1, %c0_i32_2, %c0_i32_3] : memref<2x4x8x8xf32, #tpu.memory_space<any>> -> memref<2x1x8x8xf32, #tpu.memory_space<any>>
    %1 = tpu.memref_slice %arg3[%c0_i32] : memref<2x!tpu.dma_semaphore, #tpu.memory_space<semaphore_mem>> -> memref<1x!tpu.dma_semaphore, #tpu.memory_space<semaphore_mem>>
    %2 = tpu.memref_squeeze %1 : memref<1x!tpu.dma_semaphore, #tpu.memory_space<semaphore_mem>> -> memref<!tpu.dma_semaphore, #tpu.memory_space<semaphore_mem>>
    tpu.enqueue_dma source(%0 : memref<2x1x8x8xf32, #tpu.memory_space<any>>) target(%arg1 : memref<2x1x8x8xf32, #tpu.memory_space<any>>) target_semaphore(%2 : memref<!tpu.dma_semaphore, #tpu.memory_space<semaphore_mem>>)
    %c1_i32 = arith.constant 1 : i32
    %c0_i32_4 = arith.constant 0 : i32
    %c1_i32_5 = arith.constant 1 : i32
    %c0_i32_6 = arith.constant 0 : i32
    %c0_i32_7 = arith.constant 0 : i32
    %3 = tpu.memref_slice %arg0[%c0_i32_4, %c1_i32_5, %c0_i32_6, %c0_i32_7] : memref<2x4x8x8xf32, #tpu.memory_space<any>> -> memref<2x3x8x8xf32, #tpu.memory_space<any>>
    %4 = tpu.memref_slice %arg3[%c1_i32] : memref<2x!tpu.dma_semaphore, #tpu.memory_space<semaphore_mem>> -> memref<1x!tpu.dma_semaphore, #tpu.memory_space<semaphore_mem>>
    %5 = tpu.memref_squeeze %4 : memref<1x!tpu.dma_semaphore, #tpu.memory_space<semaphore_mem>> -> memref<!tpu.dma_semaphore, #tpu.memory_space<semaphore_mem>>
    tpu.enqueue_dma source(%3 : memref<2x3x8x8xf32, #tpu.memory_space<any>>) target(%arg2 : memref<2x3x8x8xf32, #tpu.memory_space<any>>) target_semaphore(%5 : memref<!tpu.dma_semaphore, #tpu.memory_space<semaphore_mem>>)
    %c0_i32_8 = arith.constant 0 : i32
    %c0_i32_9 = arith.constant 0 : i32
    %c0_i32_10 = arith.constant 0 : i32
    %c0_i32_11 = arith.constant 0 : i32
    %c0_i32_12 = arith.constant 0 : i32
    %6 = tpu.memref_slice %arg0[%c0_i32_9, %c0_i32_10, %c0_i32_11, %c0_i32_12] : memref<2x4x8x8xf32, #tpu.memory_space<any>> -> memref<2x1x8x8xf32, #tpu.memory_space<any>>
    %7 = tpu.memref_slice %arg3[%c0_i32_8] : memref<2x!tpu.dma_semaphore, #tpu.memory_space<semaphore_mem>> -> memref<1x!tpu.dma_semaphore, #tpu.memory_space<semaphore_mem>>
    %8 = tpu.memref_squeeze %7 : memref<1x!tpu.dma_semaphore, #tpu.memory_space<semaphore_mem>> -> memref<!tpu.dma_semaphore, #tpu.memory_space<semaphore_mem>>
    tpu.wait_dma2 semaphore(%8 : memref<!tpu.dma_semaphore, #tpu.memory_space<semaphore_mem>>) src(%6 : memref<2x1x8x8xf32, #tpu.memory_space<any>>) dst(%arg1 : memref<2x1x8x8xf32, #tpu.memory_space<any>>)
    %c1_i32_13 = arith.constant 1 : i32
    %c0_i32_14 = arith.constant 0 : i32
    %c1_i32_15 = arith.constant 1 : i32
    %c0_i32_16 = arith.constant 0 : i32
    %c0_i32_17 = arith.constant 0 : i32
    %9 = tpu.memref_slice %arg0[%c0_i32_14, %c1_i32_15, %c0_i32_16, %c0_i32_17] : memref<2x4x8x8xf32, #tpu.memory_space<any>> -> memref<2x3x8x8xf32, #tpu.memory_space<any>>
    %10 = tpu.memref_slice %arg3[%c1_i32_13] : memref<2x!tpu.dma_semaphore, #tpu.memory_space<semaphore_mem>> -> memref<1x!tpu.dma_semaphore, #tpu.memory_space<semaphore_mem>>
    %11 = tpu.memref_squeeze %10 : memref<1x!tpu.dma_semaphore, #tpu.memory_space<semaphore_mem>> -> memref<!tpu.dma_semaphore, #tpu.memory_space<semaphore_mem>>
    tpu.wait_dma2 semaphore(%11 : memref<!tpu.dma_semaphore, #tpu.memory_space<semaphore_mem>>) src(%9 : memref<2x3x8x8xf32, #tpu.memory_space<any>>) dst(%arg2 : memref<2x3x8x8xf32, #tpu.memory_space<any>>)
    return
  }
}

module attributes {stable_mosaic.version = 11 : i64} {
  func.func @_split_row_kernel(%arg0: i32, %arg1: memref<1x1x1024xf32, #tpu.memory_space<vmem>>, %arg2: memref<1x1x512xf32, #tpu.memory_space<vmem>>, %arg3: memref<1x1x512xf32, #tpu.memory_space<vmem>>) attributes {dimension_semantics = [#tpu.dimension_semantics<parallel>], iteration_bounds = array<i64: 2>, scalar_prefetch = 0 : i64, scratch_operands = 0 : i64, tpu.core_type = #tpu.core_type<tc>, window_params = [{transform_indices = @transform_0, window_bounds = array<i64: 1, 1, 1024>}, {transform_indices = @transform_1, window_bounds = array<i64: 1, 1, 512>}, {transform_indices = @transform_2, window_bounds = array<i64: 1, 1, 512>}]} {
    %c0 = arith.constant 0 : index
    %c0_0 = arith.constant 0 : index
    %c0_1 = arith.constant 0 : index
    %0 = vector.load %arg1[%c0, %c0_0, %c0_1] : memref<1x1x1024xf32, #tpu.memory_space<vmem>>, vector<1x1x512xf32>
    %c0_2 = arith.constant 0 : index
    %c0_3 = arith.constant 0 : index
    %c0_4 = arith.constant 0 : index
    %1 = vector.load %arg2[%c0_2, %c0_3, %c0_4] : memref<1x1x512xf32, #tpu.memory_space<vmem>>, vector<1x1x512xf32>
    tpu.vector_store %arg2[%c0_2, %c0_3, %c0_4], %0 {strides = array<i32>} : memref<1x1x512xf32, #tpu.memory_space<vmem>>, vector<1x1x512xf32>,
    %c0_5 = arith.constant 0 : index
    %c0_6 = arith.constant 0 : index
    %c512 = arith.constant 512 : index
    %2 = vector.load %arg1[%c0_5, %c0_6, %c512] : memref<1x1x1024xf32, #tpu.memory_space<vmem>>, vector<1x1x512xf32>
    %c0_7 = arith.constant 0 : index
    %c0_8 = arith.constant 0 : index
    %c0_9 = arith.constant 0 : index
    %3 = vector.load %arg3[%c0_7, %c0_8, %c0_9] : memref<1x1x512xf32, #tpu.memory_space<vmem>>, vector<1x1x512xf32>
    tpu.vector_store %arg3[%c0_7, %c0_8, %c0_9], %2 {strides = array<i32>} : memref<1x1x512xf32, #tpu.memory_space<vmem>>, vector<1x1x512xf32>,
    return
  }
  func.func @transform_0(%arg0: i32) -> (i32, i32, i32) {
    %c0_i32 = arith.constant 0 : i32
    %c0_i32_0 = arith.constant 0 : i32
    %c0_i32_1 = arith.constant 0 : i32
    return %arg0, %c0_i32, %c0_i32_0 : i32, i32, i32
  }
  func.func @transform_1(%arg0: i32) -> (i32, i32, i32) {
    %c0_i32 = arith.constant 0 : i32
    %c0_i32_0 = arith.constant 0 : i32
    %c0_i32_1 = arith.constant 0 : i32
    return %arg0, %c0_i32, %c0_i32_0 : i32, i32, i32
  }
  func.func @transform_2(%arg0: i32) -> (i32, i32, i32) {
    %c0_i32 = arith.constant 0 : i32
    %c0_i32_0 = arith.constant 0 : i32
    %c0_i32_1 = arith.constant 0 : i32
    return %arg0, %c0_i32, %c0_i32_0 : i32, i32, i32
  }
}

</mosaic_0001>

<llo_original>
// kernel: tpu_custom_call.1
$region0: #{tpu_custom_call.1}
  #allocation0 [shape = 'u32[]', space=smem, size = 0x4, offset = 0x4, fixed_abs, tag = 'smem constant byte address 0x4 - core index']
  #allocation1 [shape = 'u32[144,128]{1,0:T(1,128)}', space=vmem, size = 0x12000, scoped, tag = 'internal scratch']
  %s0 = inlined_call_operand.hbm [shape: f32[2,1,1024], index: 0, kind: input, shape index: {}]
  %s1 = inlined_call_operand.hbm [shape: f32[2,1,512], index: 1, kind: output, shape index: {0}]
  %s2 = inlined_call_operand.hbm [shape: f32[2,1,512], index: 2, kind: output, shape index: {1}]
  %3 = xla_tuple %s1, %s2
  %s4 = sld [smem:[#allocation0]]
  $region49: #{tpu_custom_call.1} parent=0
    _
  %s6 = ssub.s32 1, %s4
  %s7 = scalar_select 0, %s6, %s4
  $region1: #{tpu_custom_call.1} parent=0
    #allocation2 [shape = 'u8[8192]{0}', space=vmem, size = 0x2000, scoped, tag = 'input window, operand 0']
    #allocation3 [shape = 's32[2]{0}', space=sflag, size = 0x8, scoped, tag = 'scoped memory for tpu_custom_call.1']
    #allocation4 [shape = 's32[2]{0}', space=sflag, size = 0x8, scoped, tag = 'scoped memory for tpu_custom_call.1']
    #allocation5 [shape = 'u8[4096]{0}', space=vmem, size = 0x1000, scoped, tag = 'output window, operand 0']
    #allocation6 [shape = 'u8[4096]{0}', space=vmem, size = 0x1000, scoped, tag = 'output window, operand 1']
    #allocation7 [shape = 's32[2]{0}', space=sflag, size = 0x8, scoped, tag = 'scoped memory for tpu_custom_call.1']
    %8 = vsyncpa [#allocation3], 0
    %s9 = scalar_lea.sflag [#allocation3], 1
    %10 = vsyncpa %s9, 0
    %11 = vsyncpa [#allocation4], 0
    %s12 = scalar_lea.sflag [#allocation4], 1
    %13 = vsyncpa %s12, 0
    %14 = vsyncpa [#allocation7], 0
    %s15 = scalar_lea.sflag [#allocation7], 1
    %16 = vsyncpa %s15, 0
    loop: start=0, step=1, limit=4
    $region2: #{tpu_custom_call.1} parent=1 // loop_pre_header
      _
    $region3: #{tpu_custom_call.1} parent=1 // loop_header
      %s18 = sphi 0, %s22
      %p19 = scmp.ge.s32.totalorder %s18, 4
      %s28 = sphi 0, %s30
      %s31 = sphi 0, %s28
      %s32 = sphi 0, %s31
      %s48 = sphi 0, %s32
      %s54 = sphi 0, %s56
      %s57 = sphi 0, %s54
      %s58 = sphi 0, %s57
      %s74 = sphi 0, %s58
      %s80 = sphi 0, %s82
      %s83 = sphi 0, %s80
      %s84 = sphi 0, %s83
      %s100 = sphi 0, %s84
    $region4: #{tpu_custom_call.1} parent=1 // loop_header_branch
      %21 = sbr.rel (%p19) target = $region8
    $region5: #{tpu_custom_call.1} parent=1 // loop_body
      %s23 = ssub.s32 %s18, 1
      %s24 = ssub.s32 %s18, 2
      %s25 = sadd.s32 %s18, 1
      %s26 = ssub.s32 %s18, %s25
      %p27 = scmp.eq.s32.totalorder %s26, 0
      %s29 = sadd.s32 %s28, 1
      %s30 = scalar_select %p27, %s28, %s29
      %p33 = pneg %p27
      %p34 = scmp.eq.s32.totalorder %s18, 1
      %p35 = por %p33, %p34
      %p36 = scmp.ne.s32.totalorder %s28, %s31
      %p37 = scmp.eq.s32.totalorder %s18, 0
      %p38 = por %p36, %p37
      %p39 = scmp.ne.s32.totalorder %s28, %s31
      %p40 = scmp.eq.s32.totalorder %s23, 1
      %p41 = por %p39, %p40
      %p42 = scmp.ne.s32.totalorder %s31, %s32
      %p43 = scmp.eq.s32.totalorder %s23, 0
      %p44 = por %p42, %p43
      %p45 = scmp.ne.s32.totalorder %s31, %s32
      %p46 = scmp.eq.s32.totalorder %s24, 1
      %p47 = por %p45, %p46
      %p49 = scmp.ne.s32.totalorder %s32, %s48
      %p50 = scmp.eq.s32.totalorder %s24, 0
      %p51 = por %p49, %p50
      %s52 = ssub.s32 %s18, %s25
      %p53 = scmp.eq.s32.totalorder %s52, 0
      %s55 = sadd.s32 %s54, 1
      %s56 = scalar_select %p53, %s54, %s55
      %p59 = pneg %p53
      %p60 = scmp.eq.s32.totalorder %s18, 1
      %p61 = por %p59, %p60
      %p62 = scmp.ne.s32.totalorder %s54, %s57
      %p63 = scmp.eq.s32.totalorder %s18, 0
      %p64 = por %p62, %p63
      %p65 = scmp.ne.s32.totalorder %s54, %s57
      %p66 = scmp.eq.s32.totalorder %s23, 1
      %p67 = por %p65, %p66
      %p68 = scmp.ne.s32.totalorder %s57, %s58
      %p69 = scmp.eq.s32.totalorder %s23, 0
      %p70 = por %p68, %p69
      %p71 = scmp.ne.s32.totalorder %s57, %s58
      %p72 = scmp.eq.s32.totalorder %s24, 1
      %p73 = por %p71, %p72
      %p75 = scmp.ne.s32.totalorder %s58, %s74
      %p76 = scmp.eq.s32.totalorder %s24, 0
      %p77 = por %p75, %p76
      %s78 = ssub.s32 %s18, %s25
      %p79 = scmp.eq.s32.totalorder %s78, 0
      %s81 = sadd.s32 %s80, 1
      %s82 = scalar_select %p79, %s80, %s81
      %p85 = pneg %p79
      %p86 = scmp.eq.s32.totalorder %s18, 1
      %p87 = por %p85, %p86
      %p88 = scmp.ne.s32.totalorder %s80, %s83
      %p89 = scmp.eq.s32.totalorder %s18, 0
      %p90 = por %p88, %p89
      %p91 = scmp.ne.s32.totalorder %s80, %s83
      %p92 = scmp.eq.s32.totalorder %s23, 1
      %p93 = por %p91, %p92
      %p94 = scmp.ne.s32.totalorder %s83, %s84
      %p95 = scmp.eq.s32.totalorder %s23, 0
      %p96 = por %p94, %p95
      %p97 = scmp.ne.s32.totalorder %s83, %s84
      %p98 = scmp.eq.s32.totalorder %s24, 1
      %p99 = por %p97, %p98
      %p101 = scmp.ne.s32.totalorder %s84, %s100
      %p102 = scmp.eq.s32.totalorder %s24, 0
      %p103 = por %p101, %p102
      %p104 = scmp.le.s32.totalorder 1, %s18
      %p105 = scmp.lt.s32.totalorder %s18, 3
      %p106 = pnand %p104, %p105
      %p107 = pneg %p106
      // Predicated region
      $region9: #{tpu_custom_call.1} parent=5 // pred_check
        _
      $region10: #{tpu_custom_call.1} parent=5 // pred_check_branch
        %109 = sbr.rel (%p106) target = $region12
      $region11: #{tpu_custom_call.1} parent=5 // pred_region
        %s110 = ssub.s32 %s18, 1
      $region12: #{tpu_custom_call.1} parent=5 // pred_fallthru
        _
      %p111 = scmp.lt.s32.totalorder %s18, 2
      // Predicated region
      $region13: #{tpu_custom_call.1} parent=5 // pred_check
        %p112 = pneg %p111
      $region14: #{tpu_custom_call.1} parent=5 // pred_check_branch
        %114 = sbr.rel (%p112) target = $region16
      $region15: #{tpu_custom_call.1} parent=5 // pred_region
        // Predicated region
        $region17: #{tpu_custom_call.1} parent=15 // pred_check
          %p115 = pneg %p38
        $region18: #{tpu_custom_call.1} parent=15 // pred_check_branch
          %117 = sbr.rel (%p115) target = $region20
        $region19: #{tpu_custom_call.1} parent=15 // pred_region
          %s118 = sand.u32 %s28, 1
          %s119 = scalar_lea.sflag [#allocation3], %s118
          %s120 = sand.u32 %s28, 1
          %s121 = smul.addr %s120, 8
          %s122 = scalar_lea.vmem [#allocation2], %s121
          %s124 = ssub.s32 128, 128
          %125 = vsyncadd %s119, %s124
          %s126 = smul.addr %s18, 8
          %s127 = smul.addr %s126, 16
          %s128 = scalar_lea.hbm %s0, %s127
          %s130 = sshll.u32 %s122, 4
          %s131 = int_to_ptr.vmem [resolvable:$true] %s130
          %133 = dma.hbm_to_vmem [thread:$0]  %s128, 128, %s131, %s119
        $region20: #{tpu_custom_call.1} parent=15 // pred_fallthru
          _
      $region16: #{tpu_custom_call.1} parent=5 // pred_fallthru
        _
      %p134 = scmp.le.s32.totalorder 1, %s18
      %p135 = scmp.lt.s32.totalorder %s18, 3
      %p136 = pnand %p134, %p135
      %p137 = pneg %p136
      // Predicated region
      $region21: #{tpu_custom_call.1} parent=5 // pred_check
        _
      $region22: #{tpu_custom_call.1} parent=5 // pred_check_branch
        %139 = sbr.rel (%p136) target = $region24
      $region23: #{tpu_custom_call.1} parent=5 // pred_region
        %s140 = ssub.s32 %s18, 1
        %s141 = sand.u32 %s31, 1
        %s142 = scalar_lea.sflag [#allocation3], %s141
        %s143 = sand.u32 %s31, 1
        %s144 = smul.addr %s143, 8
        %s145 = scalar_lea.vmem [#allocation2], %s144
        // Predicated region
        $region25: #{tpu_custom_call.1} parent=23 // pred_check
          %p146 = pneg %p44
        $region26: #{tpu_custom_call.1} parent=23 // pred_check_branch
          %148 = sbr.rel (%p146) target = $region28
        $region27: #{tpu_custom_call.1} parent=23 // pred_region
          %149 = dma.done %s142, 128
        $region28: #{tpu_custom_call.1} parent=23 // pred_fallthru
          _
        %s150 = sand.u32 %s31, 1
        %s151 = scalar_lea.sflag [#allocation3], %s150
        %s152 = sand.u32 %s31, 1
        %s153 = smul.addr %s152, 8
        %s154 = scalar_lea.vmem [#allocation2], %s153
        %p155 = pneg %p44
        %p156 = pneg %p41
        %p157 = pneg %p70
        %p158 = pneg %p67
        %s159 = sand.u32 %s57, 1
        %s160 = scalar_lea.sflag [#allocation4], %s159
        %s161 = sand.u32 %s57, 1
        %s162 = smul.addr %s161, 4
        %s163 = scalar_lea.vmem [#allocation5], %s162
        %p164 = pneg %p96
        %p165 = pneg %p93
        %s166 = sand.u32 %s83, 1
        %s167 = scalar_lea.sflag [#allocation7], %s166
        %s168 = sand.u32 %s83, 1
        %s169 = smul.addr %s168, 4
        %s170 = scalar_lea.vmem [#allocation6], %s169
        %v171 = vld [vmem:[%s145] sm:$0xf]
        %v172 = vlaneseq
        %vm173 = vcmp.ge.s32.totalorder %v172, 0
        %vm174 = vcmp.lt.s32.totalorder %v172, 512
        %vm175 = vmand %vm173, %vm174
        %176 = vst.msk [vmem:[%s163] sm:$0xf] %vm175, %v171
        %v177 = vld [vmem:[%s145 + $0x4] sm:$0xf]
        %178 = vst.msk [vmem:[%s170] sm:$0xf] %vm175, %v177
        %s179 = sand.u32 %s57, 1
        %s180 = scalar_lea.sflag [#allocation4], %s179
        %s181 = sand.u32 %s57, 1
        %s182 = smul.addr %s181, 4
        %s183 = scalar_lea.vmem [#allocation5], %s182
        %s184 = sand.u32 %s83, 1
        %s185 = scalar_lea.sflag [#allocation7], %s184
        %s186 = sand.u32 %s83, 1
        %s187 = smul.addr %s186, 4
        %s188 = scalar_lea.vmem [#allocation6], %s187
        // Predicated region
        $region29: #{tpu_custom_call.1} parent=23 // pred_check
          %p189 = pneg %p67
        $region30: #{tpu_custom_call.1} parent=23 // pred_check_branch
          %191 = sbr.rel (%p189) target = $region32
        $region31: #{tpu_custom_call.1} parent=23 // pred_region
          %s193 = ssub.s32 64, 64
          %194 = vsyncadd %s180, %s193
          %s195 = smul.addr %s23, 4
          %s196 = smul.addr %s195, 16
          %s197 = scalar_lea.hbm %s1, %s196
          %s199 = sshll.u32 %s183, 4
          %s200 = int_to_ptr.vmem [resolvable:$true] %s199
          %202 = dma.vmem_to_hbm [thread:$0]  %s200, 64, %s197, %s180
        $region32: #{tpu_custom_call.1} parent=23 // pred_fallthru
          _
        // Predicated region
        $region33: #{tpu_custom_call.1} parent=23 // pred_check
          %p203 = pneg %p93
        $region34: #{tpu_custom_call.1} parent=23 // pred_check_branch
          %205 = sbr.rel (%p203) target = $region36
        $region35: #{tpu_custom_call.1} parent=23 // pred_region
          %s207 = ssub.s32 64, 64
          %208 = vsyncadd %s185, %s207
          %s209 = smul.addr %s23, 4
          %s210 = smul.addr %s209, 16
          %s211 = scalar_lea.hbm %s2, %s210
          %s213 = sshll.u32 %s188, 4
          %s214 = int_to_ptr.vmem [resolvable:$true] %s213
          %216 = dma.vmem_to_hbm [thread:$0]  %s214, 64, %s211, %s185
        $region36: #{tpu_custom_call.1} parent=23 // pred_fallthru
          _
      $region24: #{tpu_custom_call.1} parent=5 // pred_fallthru
        _
      %p217 = scmp.le.s32.totalorder 2, %s18
      // Predicated region
      $region37: #{tpu_custom_call.1} parent=5 // pred_check
        %p218 = pneg %p217
      $region38: #{tpu_custom_call.1} parent=5 // pred_check_branch
        %220 = sbr.rel (%p218) target = $region40
      $region39: #{tpu_custom_call.1} parent=5 // pred_region
        %s221 = ssub.s32 %s18, 2
        // Predicated region
        $region41: #{tpu_custom_call.1} parent=39 // pred_check
          %p222 = pneg %p73
        $region42: #{tpu_custom_call.1} parent=39 // pred_check_branch
          %224 = sbr.rel (%p222) target = $region44
        $region43: #{tpu_custom_call.1} parent=39 // pred_region
          %s225 = sand.u32 %s58, 1
          %s226 = scalar_lea.sflag [#allocation4], %s225
          %s227 = sand.u32 %s58, 1
          %s228 = smul.addr %s227, 4
          %s229 = scalar_lea.vmem [#allocation5], %s228
          %230 = dma.done %s226, 64
        $region44: #{tpu_custom_call.1} parent=39 // pred_fallthru
          _
        // Predicated region
        $region45: #{tpu_custom_call.1} parent=39 // pred_check
          %p231 = pneg %p99
        $region46: #{tpu_custom_call.1} parent=39 // pred_check_branch
          %233 = sbr.rel (%p231) target = $region48
        $region47: #{tpu_custom_call.1} parent=39 // pred_region
          %s234 = sand.u32 %s84, 1
          %s235 = scalar_lea.sflag [#allocation7], %s234
          %s236 = sand.u32 %s84, 1
          %s237 = smul.addr %s236, 4
          %s238 = scalar_lea.vmem [#allocation6], %s237
          %239 = dma.done %s235, 64
        $region48: #{tpu_custom_call.1} parent=39 // pred_fallthru
          _
      $region40: #{tpu_custom_call.1} parent=5 // pred_fallthru
        _
    $region6: #{tpu_custom_call.1} parent=1 // loop_footer
      %s22 = sadd.s32 1, %s18
    $region7: #{tpu_custom_call.1} parent=1 // loop_footer_branch
      %17 = sbr.rel target = $region3
    $region8: #{tpu_custom_call.1} parent=1 // loop_exit
      _
    %240 = vsyncpa [#allocation3], 1
    %s241 = scalar_lea.sflag [#allocation3], 1
    %242 = vsyncpa %s241, 1
    %243 = vsyncpa [#allocation4], 1
    %s244 = scalar_lea.sflag [#allocation4], 1
    %245 = vsyncpa %s244, 1
    %246 = vsyncpa [#allocation7], 1
    %s247 = scalar_lea.sflag [#allocation7], 1
    %248 = vsyncpa %s247, 1

</llo_original>
